<compile_context>
chip_gen: v5e
topology: v5e:2x2
jax: 0.10.0
libtpu: 0.0.40
codegen_flags: <defaults>
</compile_context>

<pallas_src>
import functools

import jax
import jax.numpy as jnp
from jax import lax
from jax.experimental import pallas as pl
from jax.experimental.pallas import tpu as pltpu


# ---------------------------------------------------------------------------
# Kernel
# ---------------------------------------------------------------------------
def network_kernel(xi_ref, xj_ref,          # (TB, C, HW)  f32  streamed
                   wres_ref, bres_ref,       # (C, R) bf16, (1, R)  f32
                   w1_ref, b1_ref,           # (R, 2R) bf16, (1, 2R) f32
                   w2_ref, b2_ref,           # (2R, P) bf16, (1, P)  f32
                   oi_ref, oj_ref,           # (TB, P) f32
                   *, feature_dim, class_num, inv_hw):
    f, k = feature_dim, class_num

    def head(x):
        # Backbone: global-average-pool over HW (lane reduce) + Linear + ReLU.
        pooled = jnp.sum(x, axis=2) * inv_hw                    # (TB, C) f32
        h = jnp.dot(pooled.astype(jnp.bfloat16), wres_ref[...],
                    preferred_element_type=jnp.float32) + bres_ref[...]
        h = jnp.maximum(h, 0.0)

        # Fused first projector layer: [instance | cluster], ReLU.
        v = jnp.dot(h.astype(jnp.bfloat16), w1_ref[...],
                    preferred_element_type=jnp.float32) + b1_ref[...]
        v = jnp.maximum(v, 0.0)

        # Fused second projector layer (block-diagonal) -> lane-dense slab:
        # lanes [0, F) = instance output z (pre-normalize),
        # lanes [F, F+K) = cluster logits, remaining lanes zero padding.
        y = jnp.dot(v.astype(jnp.bfloat16), w2_ref[...],
                    preferred_element_type=jnp.float32) + b2_ref[...]

        lane = lax.broadcasted_iota(jnp.int32, y.shape, 1)
        mask_z = lane < f
        mask_c = (lane >= f) & (lane < f + k)

        # L2 normalize of z rows: torch.normalize => x / max(||x||, 1e-12).
        zsq = jnp.sum(jnp.where(mask_z, y * y, 0.0), axis=1, keepdims=True)
        inv_norm = lax.rsqrt(jnp.maximum(zsq, 1e-24))            # EUP

        # Softmax over the cluster lanes (max-subtracted, exact divide).
        logit = jnp.where(mask_c, y, -jnp.inf)
        m = jnp.max(logit, axis=1, keepdims=True)
        e = jnp.exp(logit - m)
        den = jnp.sum(e, axis=1, keepdims=True)

        return jnp.where(mask_z, y * inv_norm, e / den)

    oi_ref[...] = head(xi_ref[...])
    oj_ref[...] = head(xj_ref[...])


# ---------------------------------------------------------------------------
# Wrapper helpers
# ---------------------------------------------------------------------------
def _round_up(x, m):
    return (x + m - 1) // m * m


def _vmem_budget_bytes():
    """Scoped-VMEM limit per generation: ~96 MiB on 128-MiB parts, ~48 on v7x."""
    cap = 64 * 1024 * 1024                     # conservative default (v7x)
    try:
        info = pltpu.get_tpu_info()
        cap_attr = getattr(info, "vmem_capacity_bytes", None)
        if cap_attr:
            cap = int(cap_attr)
    except Exception:
        pass
    return min(cap * 3 // 4, 100 * 1024 * 1024)


def _choose_tb(batch, chw, out_pad, vmem_limit_bytes):
    """VMEM-aware batch-tile: 2 views * 2 pipeline buffers * f32 (in + out)."""
    row_bytes = 2 * 2 * 4 * (chw + out_pad)
    tb = int(vmem_limit_bytes * 0.75) // max(row_bytes, 1)
    tb = max(8, min(1024, tb // 8 * 8))
    if batch > 8:
        # Ensure >= 2 grid blocks so v7x's second TensorCore gets work.
        tb = min(tb, _round_up(pl.cdiv(batch, 2), 8))
    if tb >= batch:
        tb = batch                             # single full-extent block
    return tb


def pack_params(params, feature_dim, class_num):
    """Weight packing done ONCE, outside the jitted per-step forward."""
    R = params["w_i1"].shape[0]
    F, K = feature_dim, class_num
    out_pad = _round_up(max(F + K, 128), 128)

    w_res = params["w_res"].astype(jnp.bfloat16)                     # (C, R)
    b_res = params["b_res"].astype(jnp.float32)                      # (1, R)

    # Fused projector stage 1: [w_i1 | w_c1].
    w1 = jnp.concatenate([params["w_i1"], params["w_c1"]], axis=1).astype(jnp.bfloat16)
    b1 = jnp.concatenate([params["b_i1"], params["b_c1"]], axis=1).astype(jnp.float32)

    # Fused projector stage 2: block-diagonal, lane-padded to out_pad.
    w2 = jnp.zeros((2 * R, out_pad), jnp.float32)
    w2 = w2.at[:R, :F].set(params["w_i2"]).at[R:, F:F + K].set(params["w_c2"])
    w2 = w2.astype(jnp.bfloat16)
    b2 = jnp.zeros((1, out_pad), jnp.float32)
    b2 = b2.at[:, :F].set(params["b_i2"]).at[:, F:F + K].set(params["b_c2"])

    return dict(w_res=w_res, b_res=b_res, w1=w1, b1=b1, w2=w2, b2=b2)


def _fused_head(xi, xj, p, feature_dim, class_num):
    """xi/xj: (B, C, HW) f32 -> two (B, OUT_PAD) slabs (z in [:F], c in [F:F+K])."""
    B, C, HW = xi.shape
    R = p["w_res"].shape[1]
    out_pad = p["w2"].shape[1]
    F, K = feature_dim, class_num

    vmem_limit = _vmem_budget_bytes()
    TB = _choose_tb(B, C * HW, out_pad, vmem_limit)
    grid = (pl.cdiv(B, TB),)   # non-divisible batches use a clamped last block

    kernel = functools.partial(network_kernel, feature_dim=F, class_num=K,
                               inv_hw=1.0 / HW)

    out_i, out_j = pl.pallas_call(
        kernel,
        out_shape=(jax.ShapeDtypeStruct((B, out_pad), jnp.float32),
                   jax.ShapeDtypeStruct((B, out_pad), jnp.float32)),
        grid=grid,
        in_specs=[
            pl.BlockSpec((TB, C, HW), lambda b: (b, 0, 0)),     # streamed view i
            pl.BlockSpec((TB, C, HW), lambda b: (b, 0, 0)),     # streamed view j
            pl.BlockSpec((C, R), lambda b: (0, 0)),             # resident weights
            pl.BlockSpec((1, R), lambda b: (0, 0)),
            pl.BlockSpec((R, 2 * R), lambda b: (0, 0)),
            pl.BlockSpec((1, 2 * R), lambda b: (0, 0)),
            pl.BlockSpec((2 * R, out_pad), lambda b: (0, 0)),
            pl.BlockSpec((1, out_pad), lambda b: (0, 0)),
        ],
        out_specs=(pl.BlockSpec((TB, out_pad), lambda b: (b, 0)),
                   pl.BlockSpec((TB, out_pad), lambda b: (b, 0))),
        compiler_params=pltpu.CompilerParams(
            dimension_semantics=("parallel",),       # megacore on v7x
            vmem_limit_bytes=vmem_limit,
        ),
    )(xi, xj, p["w_res"], p["b_res"], p["w1"], p["b1"], p["w2"], p["b2"])
    return out_i, out_j


def network_forward(x_i, x_j, packed, feature_dim, class_num):
    """Single fused pallas_call for both augmented views (weights loaded once)."""
    B, C, H, W = x_i.shape
    HW = H * W
    # Trailing-dim merge: free layout-preserving reshape, no HBM copy.
    xi = x_i.reshape(B, C, HW)
    xj = x_j.reshape(B, C, HW)
    out_i, out_j = _fused_head(xi, xj, packed, feature_dim, class_num)
    z_i = out_i[:, :feature_dim]
    z_j = out_j[:, :feature_dim]
    c_i = out_i[:, feature_dim:feature_dim + class_num]
    c_j = out_j[:, feature_dim:feature_dim + class_num]
    return z_i, z_j, c_i, c_j


# ---------------------------------------------------------------------------
# Params + pure-JAX reference
# ---------------------------------------------------------------------------
def init_params(key, in_channels, rep_dim, feature_dim, class_num):
    """Deterministic PyTorch-Linear-style init. Weights stored as (in, out)."""
    def linear(k, fan_in, fan_out):
        k1, k2 = jax.random.split(k)
        bound = 1.0 / jnp.sqrt(fan_in)
        w = jax.random.uniform(k1, (fan_in, fan_out), jnp.float32, -bound, bound)
        b = jax.random.uniform(k2, (1, fan_out), jnp.float32, -bound, bound)
        return w, b

    keys = jax.random.split(key, 5)
    w_res, b_res = linear(keys[0], in_channels, rep_dim)
    w_i1, b_i1 = linear(keys[1], rep_dim, rep_dim)
    w_i2, b_i2 = linear(keys[2], rep_dim, feature_dim)
    w_c1, b_c1 = linear(keys[3], rep_dim, rep_dim)
    w_c2, b_c2 = linear(keys[4], rep_dim, class_num)
    return dict(w_res=w_res, b_res=b_res,
                w_i1=w_i1, b_i1=b_i1, w_i2=w_i2, b_i2=b_i2,
                w_c1=w_c1, b_c1=b_c1, w_c2=w_c2, b_c2=b_c2)


def reference_forward(x_i, x_j, params, feature_dim, class_num):
    """Pure-JAX f32 reference of the same math (backbone = pool+Linear+ReLU)."""
    def backbone(x):
        pooled = jnp.mean(x, axis=(2, 3))
        return jnp.maximum(pooled @ params["w_res"] + params["b_res"], 0.0)

    def inst(h):
        v = jnp.maximum(h @ params["w_i1"] + params["b_i1"], 0.0)
        z = v @ params["w_i2"] + params["b_i2"]
        n = jnp.maximum(jnp.linalg.norm(z, axis=1, keepdims=True), 1e-12)
        return z / n

    def clus(h):
        v = jnp.maximum(h @ params["w_c1"] + params["b_c1"], 0.0)
        logits = v @ params["w_c2"] + params["b_c2"]
        return jax.nn.softmax(logits, axis=1)

    h_i, h_j = backbone(x_i), backbone(x_j)
    return inst(h_i), inst(h_j), clus(h_i), clus(h_j)


# ---------------------------------------------------------------------------
# Self-test
# ---------------------------------------------------------------------------
if __name__ == "__main__":
    B, C, H, W = 2, 4, 16, 16
    REP_DIM, FEATURE_DIM, CLASS_NUM = 32, 16, 10

    key = jax.random.PRNGKey(0)
    kx1, kx2, kp = jax.random.split(key, 3)
    x_i = jax.random.normal(kx1, (B, C, H, W), jnp.float32)
    x_j = jax.random.normal(kx2, (B, C, H, W), jnp.float32)
    params = init_params(kp, C, REP_DIM, FEATURE_DIM, CLASS_NUM)

    # Packing runs once, outside the jitted per-call forward.
    packed = pack_params(params, FEATURE_DIM, CLASS_NUM)

    fwd = jax.jit(functools.partial(network_forward,
                                    feature_dim=FEATURE_DIM, class_num=CLASS_NUM))
    z_i, z_j, c_i, c_j = fwd(x_i, x_j, packed)
    jax.block_until_ready((z_i, z_j, c_i, c_j))

    assert z_i.shape == (B, FEATURE_DIM) and z_j.shape == (B, FEATURE_DIM)
    assert c_i.shape == (B, CLASS_NUM) and c_j.shape == (B, CLASS_NUM)
    assert not (jnp.any(jnp.isnan(z_i)) or jnp.any(jnp.isnan(c_i)))

    # z rows unit-norm; c rows are probabilities summing to 1 (exact divide).
    assert jnp.allclose(jnp.linalg.norm(z_i, axis=1), 1.0, atol=1e-3)
    assert jnp.allclose(jnp.linalg.norm(z_j, axis=1), 1.0, atol=1e-3)
    assert jnp.allclose(jnp.sum(c_i, axis=1), 1.0, atol=1e-3)
    assert jnp.allclose(jnp.sum(c_j, axis=1), 1.0, atol=1e-3)

    # Match the pure-f32 reference (bf16 MXU operands => lenient tolerance).
    rz_i, rz_j, rc_i, rc_j = reference_forward(x_i, x_j, params,
                                               FEATURE_DIM, CLASS_NUM)
    assert jnp.allclose(z_i, rz_i, atol=2e-2, rtol=2e-2)
    assert jnp.allclose(z_j, rz_j, atol=2e-2, rtol=2e-2)
    assert jnp.allclose(c_i, rc_i, atol=2e-2, rtol=2e-2)
    assert jnp.allclose(c_j, rc_j, atol=2e-2, rtol=2e-2)

    print("KERNEL_OK")
</pallas_src>

<mosaic_0001>
module attributes {stable_mosaic.version = 11 : i64} {
  func.func @network_kernel(%arg0: i32, %arg1: memref<2x4x256xf32, #tpu.memory_space<vmem>>, %arg2: memref<2x4x256xf32, #tpu.memory_space<vmem>>, %arg3: memref<4x32xbf16, #tpu.memory_space<vmem>>, %arg4: memref<1x32xf32, #tpu.memory_space<vmem>>, %arg5: memref<32x64xbf16, #tpu.memory_space<vmem>>, %arg6: memref<1x64xf32, #tpu.memory_space<vmem>>, %arg7: memref<64x128xbf16, #tpu.memory_space<vmem>>, %arg8: memref<1x128xf32, #tpu.memory_space<vmem>>, %arg9: memref<2x128xf32, #tpu.memory_space<vmem>>, %arg10: memref<2x128xf32, #tpu.memory_space<vmem>>) attributes {dimension_semantics = [#tpu.dimension_semantics<parallel>], iteration_bounds = array<i64: 1>, scalar_prefetch = 0 : i64, scratch_operands = 0 : i64, tpu.core_type = #tpu.core_type<tc>, window_params = [{transform_indices = @transform_0, window_bounds = array<i64: 2, 4, 256>}, {transform_indices = @transform_1, window_bounds = array<i64: 2, 4, 256>}, {pipeline_mode = #tpu.pipeline_mode<synchronous>, transform_indices = @transform_2, window_bounds = array<i64: 4, 32>}, {pipeline_mode = #tpu.pipeline_mode<synchronous>, transform_indices = @transform_3, window_bounds = array<i64: 1, 32>}, {pipeline_mode = #tpu.pipeline_mode<synchronous>, transform_indices = @transform_4, window_bounds = array<i64: 32, 64>}, {pipeline_mode = #tpu.pipeline_mode<synchronous>, transform_indices = @transform_5, window_bounds = array<i64: 1, 64>}, {pipeline_mode = #tpu.pipeline_mode<synchronous>, transform_indices = @transform_6, window_bounds = array<i64: 64, 128>}, {pipeline_mode = #tpu.pipeline_mode<synchronous>, transform_indices = @transform_7, window_bounds = array<i64: 1, 128>}, {transform_indices = @transform_8, window_bounds = array<i64: 2, 128>}, {transform_indices = @transform_9, window_bounds = array<i64: 2, 128>}]} {
    %c0 = arith.constant 0 : index
    %c0_0 = arith.constant 0 : index
    %c0_1 = arith.constant 0 : index
    %0 = vector.load %arg1[%c0, %c0_0, %c0_1] : memref<2x4x256xf32, #tpu.memory_space<vmem>>, vector<2x4x256xf32>
    %cst = arith.constant dense<0.000000e+00> : vector<2x4xf32>
    %1 = vector.multi_reduction <add>, %0, %cst [2] : vector<2x4x256xf32> to vector<2x4xf32>
    %cst_2 = arith.constant 3.906250e-03 : f32
    %2 = vector.broadcast %cst_2 : f32 to vector<2x4xf32>
    %3 = arith.mulf %1, %2 : vector<2x4xf32>
    %4 = arith.truncf %3 : vector<2x4xf32> to vector<2x4xbf16>
    %c0_3 = arith.constant 0 : index
    %c0_4 = arith.constant 0 : index
    %5 = vector.load %arg3[%c0_3, %c0_4] : memref<4x32xbf16, #tpu.memory_space<vmem>>, vector<4x32xbf16>
    %cst_5 = arith.constant dense<0.000000e+00> : vector<2x32xf32>
    %6 = tpu.matmul %4, %5, %cst_5 {dimension_numbers = #tpu.dot_dimension_numbers<[1], [0], [0], [1], [0, 0, 1, 1], [], []>} : vector<2x4xbf16>, vector<4x32xbf16>, vector<2x32xf32> -> vector<2x32xf32>
    %c0_6 = arith.constant 0 : index
    %c0_7 = arith.constant 0 : index
    %7 = vector.load %arg4[%c0_6, %c0_7] : memref<1x32xf32, #tpu.memory_space<vmem>>, vector<1x32xf32>
    %8 = vector.broadcast %7 : vector<1x32xf32> to vector<2x32xf32>
    %9 = arith.addf %6, %8 : vector<2x32xf32>
    %cst_8 = arith.constant 0.000000e+00 : f32
    %10 = vector.broadcast %cst_8 : f32 to vector<2x32xf32>
    %11 = arith.maximumf %9, %10 : vector<2x32xf32>
    %12 = arith.truncf %11 : vector<2x32xf32> to vector<2x32xbf16>
    %c0_9 = arith.constant 0 : index
    %c0_10 = arith.constant 0 : index
    %13 = vector.load %arg5[%c0_9, %c0_10] : memref<32x64xbf16, #tpu.memory_space<vmem>>, vector<32x64xbf16>
    %cst_11 = arith.constant dense<0.000000e+00> : vector<2x64xf32>
    %14 = tpu.matmul %12, %13, %cst_11 {dimension_numbers = #tpu.dot_dimension_numbers<[1], [0], [0], [1], [0, 0, 1, 1], [], []>} : vector<2x32xbf16>, vector<32x64xbf16>, vector<2x64xf32> -> vector<2x64xf32>
    %c0_12 = arith.constant 0 : index
    %c0_13 = arith.constant 0 : index
    %15 = vector.load %arg6[%c0_12, %c0_13] : memref<1x64xf32, #tpu.memory_space<vmem>>, vector<1x64xf32>
    %16 = vector.broadcast %15 : vector<1x64xf32> to vector<2x64xf32>
    %17 = arith.addf %14, %16 : vector<2x64xf32>
    %cst_14 = arith.constant 0.000000e+00 : f32
    %18 = vector.broadcast %cst_14 : f32 to vector<2x64xf32>
    %19 = arith.maximumf %17, %18 : vector<2x64xf32>
    %20 = arith.truncf %19 : vector<2x64xf32> to vector<2x64xbf16>
    %c0_15 = arith.constant 0 : index
    %c0_16 = arith.constant 0 : index
    %21 = vector.load %arg7[%c0_15, %c0_16] : memref<64x128xbf16, #tpu.memory_space<vmem>>, vector<64x128xbf16>
    %cst_17 = arith.constant dense<0.000000e+00> : vector<2x128xf32>
    %22 = tpu.matmul %20, %21, %cst_17 {dimension_numbers = #tpu.dot_dimension_numbers<[1], [0], [0], [1], [0, 0, 1, 1], [], []>} : vector<2x64xbf16>, vector<64x128xbf16>, vector<2x128xf32> -> vector<2x128xf32>
    %c0_18 = arith.constant 0 : index
    %c0_19 = arith.constant 0 : index
    %23 = vector.load %arg8[%c0_18, %c0_19] : memref<1x128xf32, #tpu.memory_space<vmem>>, vector<1x128xf32>
    %24 = vector.broadcast %23 : vector<1x128xf32> to vector<2x128xf32>
    %25 = arith.addf %22, %24 : vector<2x128xf32>
    %26 = tpu.iota {dimensions = array<i32: 1>} : vector<2x128xi32>
    %c16_i32 = arith.constant 16 : i32
    %27 = vector.broadcast %c16_i32 : i32 to vector<2x128xi32>
    %28 = arith.cmpi slt, %26, %27 : vector<2x128xi32>
    %c16_i32_20 = arith.constant 16 : i32
    %29 = vector.broadcast %c16_i32_20 : i32 to vector<2x128xi32>
    %30 = arith.cmpi sge, %26, %29 : vector<2x128xi32>
    %c26_i32 = arith.constant 26 : i32
    %31 = vector.broadcast %c26_i32 : i32 to vector<2x128xi32>
    %32 = arith.cmpi slt, %26, %31 : vector<2x128xi32>
    %33 = arith.andi %30, %32 : vector<2x128xi1>
    %34 = arith.mulf %25, %25 : vector<2x128xf32>
    %cst_21 = arith.constant 0.000000e+00 : f32
    %35 = vector.broadcast %cst_21 : f32 to vector<2x128xf32>
    %36 = arith.select %28, %34, %35 : vector<2x128xi1>, vector<2x128xf32>
    %cst_22 = arith.constant dense<0.000000e+00> : vector<2xf32>
    %37 = vector.multi_reduction <add>, %36, %cst_22 [1] : vector<2x128xf32> to vector<2xf32>
    %38 = vector.shape_cast %37 : vector<2xf32> to vector<2x1xf32>
    %cst_23 = arith.constant 1.000000e-24 : f32
    %39 = vector.broadcast %cst_23 : f32 to vector<2x1xf32>
    %40 = arith.maximumf %38, %39 : vector<2x1xf32>
    %41 = math.rsqrt %40 : vector<2x1xf32>
    %cst_24 = arith.constant 0xFF800000 : f32
    %42 = vector.broadcast %cst_24 : f32 to vector<2x128xf32>
    %43 = arith.select %33, %25, %42 : vector<2x128xi1>, vector<2x128xf32>
    %cst_25 = arith.constant dense<0xFF800000> : vector<2xf32>
    %44 = vector.multi_reduction <maximumf>, %43, %cst_25 [1] : vector<2x128xf32> to vector<2xf32>
    %45 = vector.shape_cast %44 : vector<2xf32> to vector<2x1xf32>
    %46 = vector.broadcast %45 : vector<2x1xf32> to vector<2x128xf32>
    %47 = arith.subf %43, %46 : vector<2x128xf32>
    %48 = math.exp %47 : vector<2x128xf32>
    %cst_26 = arith.constant dense<0.000000e+00> : vector<2xf32>
    %49 = vector.multi_reduction <add>, %48, %cst_26 [1] : vector<2x128xf32> to vector<2xf32>
    %50 = vector.shape_cast %49 : vector<2xf32> to vector<2x1xf32>
    %51 = vector.broadcast %41 : vector<2x1xf32> to vector<2x128xf32>
    %52 = arith.mulf %25, %51 : vector<2x128xf32>
    %53 = vector.broadcast %50 : vector<2x1xf32> to vector<2x128xf32>
    %54 = arith.divf %48, %53 : vector<2x128xf32>
    %55 = arith.select %28, %52, %54 : vector<2x128xi1>, vector<2x128xf32>
    %c0_27 = arith.constant 0 : index
    %c0_28 = arith.constant 0 : index
    %56 = vector.load %arg9[%c0_27, %c0_28] : memref<2x128xf32, #tpu.memory_space<vmem>>, vector<2x128xf32>
    tpu.vector_store %arg9[%c0_27, %c0_28], %55 {strides = array<i32>} : memref<2x128xf32, #tpu.memory_space<vmem>>, vector<2x128xf32>,
    %c0_29 = arith.constant 0 : index
    %c0_30 = arith.constant 0 : index
    %c0_31 = arith.constant 0 : index
    %57 = vector.load %arg2[%c0_29, %c0_30, %c0_31] : memref<2x4x256xf32, #tpu.memory_space<vmem>>, vector<2x4x256xf32>
    %cst_32 = arith.constant dense<0.000000e+00> : vector<2x4xf32>
    %58 = vector.multi_reduction <add>, %57, %cst_32 [2] : vector<2x4x256xf32> to vector<2x4xf32>
    %cst_33 = arith.constant 3.906250e-03 : f32
    %59 = vector.broadcast %cst_33 : f32 to vector<2x4xf32>
    %60 = arith.mulf %58, %59 : vector<2x4xf32>
    %61 = arith.truncf %60 : vector<2x4xf32> to vector<2x4xbf16>
    %c0_34 = arith.constant 0 : index
    %c0_35 = arith.constant 0 : index
    %62 = vector.load %arg3[%c0_34, %c0_35] : memref<4x32xbf16, #tpu.memory_space<vmem>>, vector<4x32xbf16>
    %cst_36 = arith.constant dense<0.000000e+00> : vector<2x32xf32>
    %63 = tpu.matmul %61, %62, %cst_36 {dimension_numbers = #tpu.dot_dimension_numbers<[1], [0], [0], [1], [0, 0, 1, 1], [], []>} : vector<2x4xbf16>, vector<4x32xbf16>, vector<2x32xf32> -> vector<2x32xf32>
    %c0_37 = arith.constant 0 : index
    %c0_38 = arith.constant 0 : index
    %64 = vector.load %arg4[%c0_37, %c0_38] : memref<1x32xf32, #tpu.memory_space<vmem>>, vector<1x32xf32>
    %65 = vector.broadcast %64 : vector<1x32xf32> to vector<2x32xf32>
    %66 = arith.addf %63, %65 : vector<2x32xf32>
    %cst_39 = arith.constant 0.000000e+00 : f32
    %67 = vector.broadcast %cst_39 : f32 to vector<2x32xf32>
    %68 = arith.maximumf %66, %67 : vector<2x32xf32>
    %69 = arith.truncf %68 : vector<2x32xf32> to vector<2x32xbf16>
    %c0_40 = arith.constant 0 : index
    %c0_41 = arith.constant 0 : index
    %70 = vector.load %arg5[%c0_40, %c0_41] : memref<32x64xbf16, #tpu.memory_space<vmem>>, vector<32x64xbf16>
    %cst_42 = arith.constant dense<0.000000e+00> : vector<2x64xf32>
    %71 = tpu.matmul %69, %70, %cst_42 {dimension_numbers = #tpu.dot_dimension_numbers<[1], [0], [0], [1], [0, 0, 1, 1], [], []>} : vector<2x32xbf16>, vector<32x64xbf16>, vector<2x64xf32> -> vector<2x64xf32>
    %c0_43 = arith.constant 0 : index
    %c0_44 = arith.constant 0 : index
    %72 = vector.load %arg6[%c0_43, %c0_44] : memref<1x64xf32, #tpu.memory_space<vmem>>, vector<1x64xf32>
    %73 = vector.broadcast %72 : vector<1x64xf32> to vector<2x64xf32>
    %74 = arith.addf %71, %73 : vector<2x64xf32>
    %cst_45 = arith.constant 0.000000e+00 : f32
    %75 = vector.broadcast %cst_45 : f32 to vector<2x64xf32>
    %76 = arith.maximumf %74, %75 : vector<2x64xf32>
    %77 = arith.truncf %76 : vector<2x64xf32> to vector<2x64xbf16>
    %c0_46 = arith.constant 0 : index
    %c0_47 = arith.constant 0 : index
    %78 = vector.load %arg7[%c0_46, %c0_47] : memref<64x128xbf16, #tpu.memory_space<vmem>>, vector<64x128xbf16>
    %cst_48 = arith.constant dense<0.000000e+00> : vector<2x128xf32>
    %79 = tpu.matmul %77, %78, %cst_48 {dimension_numbers = #tpu.dot_dimension_numbers<[1], [0], [0], [1], [0, 0, 1, 1], [], []>} : vector<2x64xbf16>, vector<64x128xbf16>, vector<2x128xf32> -> vector<2x128xf32>
    %c0_49 = arith.constant 0 : index
    %c0_50 = arith.constant 0 : index
    %80 = vector.load %arg8[%c0_49, %c0_50] : memref<1x128xf32, #tpu.memory_space<vmem>>, vector<1x128xf32>
    %81 = vector.broadcast %80 : vector<1x128xf32> to vector<2x128xf32>
    %82 = arith.addf %79, %81 : vector<2x128xf32>
    %83 = tpu.iota {dimensions = array<i32: 1>} : vector<2x128xi32>
    %c16_i32_51 = arith.constant 16 : i32
    %84 = vector.broadcast %c16_i32_51 : i32 to vector<2x128xi32>
    %85 = arith.cmpi slt, %83, %84 : vector<2x128xi32>
    %c16_i32_52 = arith.constant 16 : i32
    %86 = vector.broadcast %c16_i32_52 : i32 to vector<2x128xi32>
    %87 = arith.cmpi sge, %83, %86 : vector<2x128xi32>
    %c26_i32_53 = arith.constant 26 : i32
    %88 = vector.broadcast %c26_i32_53 : i32 to vector<2x128xi32>
    %89 = arith.cmpi slt, %83, %88 : vector<2x128xi32>
    %90 = arith.andi %87, %89 : vector<2x128xi1>
    %91 = arith.mulf %82, %82 : vector<2x128xf32>
    %cst_54 = arith.constant 0.000000e+00 : f32
    %92 = vector.broadcast %cst_54 : f32 to vector<2x128xf32>
    %93 = arith.select %85, %91, %92 : vector<2x128xi1>, vector<2x128xf32>
    %cst_55 = arith.constant dense<0.000000e+00> : vector<2xf32>
    %94 = vector.multi_reduction <add>, %93, %cst_55 [1] : vector<2x128xf32> to vector<2xf32>
    %95 = vector.shape_cast %94 : vector<2xf32> to vector<2x1xf32>
    %cst_56 = arith.constant 1.000000e-24 : f32
    %96 = vector.broadcast %cst_56 : f32 to vector<2x1xf32>
    %97 = arith.maximumf %95, %96 : vector<2x1xf32>
    %98 = math.rsqrt %97 : vector<2x1xf32>
    %cst_57 = arith.constant 0xFF800000 : f32
    %99 = vector.broadcast %cst_57 : f32 to vector<2x128xf32>
    %100 = arith.select %90, %82, %99 : vector<2x128xi1>, vector<2x128xf32>
    %cst_58 = arith.constant dense<0xFF800000> : vector<2xf32>
    %101 = vector.multi_reduction <maximumf>, %100, %cst_58 [1] : vector<2x128xf32> to vector<2xf32>
    %102 = vector.shape_cast %101 : vector<2xf32> to vector<2x1xf32>
    %103 = vector.broadcast %102 : vector<2x1xf32> to vector<2x128xf32>
    %104 = arith.subf %100, %103 : vector<2x128xf32>
    %105 = math.exp %104 : vector<2x128xf32>
    %cst_59 = arith.constant dense<0.000000e+00> : vector<2xf32>
    %106 = vector.multi_reduction <add>, %105, %cst_59 [1] : vector<2x128xf32> to vector<2xf32>
    %107 = vector.shape_cast %106 : vector<2xf32> to vector<2x1xf32>
    %108 = vector.broadcast %98 : vector<2x1xf32> to vector<2x128xf32>
    %109 = arith.mulf %82, %108 : vector<2x128xf32>
    %110 = vector.broadcast %107 : vector<2x1xf32> to vector<2x128xf32>
    %111 = arith.divf %105, %110 : vector<2x128xf32>
    %112 = arith.select %85, %109, %111 : vector<2x128xi1>, vector<2x128xf32>
    %c0_60 = arith.constant 0 : index
    %c0_61 = arith.constant 0 : index
    %113 = vector.load %arg10[%c0_60, %c0_61] : memref<2x128xf32, #tpu.memory_space<vmem>>, vector<2x128xf32>
    tpu.vector_store %arg10[%c0_60, %c0_61], %112 {strides = array<i32>} : memref<2x128xf32, #tpu.memory_space<vmem>>, vector<2x128xf32>,
    return
  }
  func.func @transform_0(%arg0: i32) -> (i32, i32, i32) {
    %c0_i32 = arith.constant 0 : i32
    %c0_i32_0 = arith.constant 0 : i32
    %c0_i32_1 = arith.constant 0 : i32
    return %arg0, %c0_i32, %c0_i32_0 : i32, i32, i32
  }
  func.func @transform_1(%arg0: i32) -> (i32, i32, i32) {
    %c0_i32 = arith.constant 0 : i32
    %c0_i32_0 = arith.constant 0 : i32
    %c0_i32_1 = arith.constant 0 : i32
    return %arg0, %c0_i32, %c0_i32_0 : i32, i32, i32
  }
  func.func @transform_2(%arg0: i32) -> (i32, i32) {
    %c0_i32 = arith.constant 0 : i32
    %c0_i32_0 = arith.constant 0 : i32
    %c0_i32_1 = arith.constant 0 : i32
    return %c0_i32, %c0_i32_0 : i32, i32
  }
  func.func @transform_3(%arg0: i32) -> (i32, i32) {
    %c0_i32 = arith.constant 0 : i32
    %c0_i32_0 = arith.constant 0 : i32
    %c0_i32_1 = arith.constant 0 : i32
    return %c0_i32, %c0_i32_0 : i32, i32
  }
  func.func @transform_4(%arg0: i32) -> (i32, i32) {
    %c0_i32 = arith.constant 0 : i32
    %c0_i32_0 = arith.constant 0 : i32
    %c0_i32_1 = arith.constant 0 : i32
    return %c0_i32, %c0_i32_0 : i32, i32
  }
  func.func @transform_5(%arg0: i32) -> (i32, i32) {
    %c0_i32 = arith.constant 0 : i32
    %c0_i32_0 = arith.constant 0 : i32
    %c0_i32_1 = arith.constant 0 : i32
    return %c0_i32, %c0_i32_0 : i32, i32
  }
  func.func @transform_6(%arg0: i32) -> (i32, i32) {
    %c0_i32 = arith.constant 0 : i32
    %c0_i32_0 = arith.constant 0 : i32
    %c0_i32_1 = arith.constant 0 : i32
    return %c0_i32, %c0_i32_0 : i32, i32
  }
  func.func @transform_7(%arg0: i32) -> (i32, i32) {
    %c0_i32 = arith.constant 0 : i32
    %c0_i32_0 = arith.constant 0 : i32
    %c0_i32_1 = arith.constant 0 : i32
    return %c0_i32, %c0_i32_0 : i32, i32
  }
  func.func @transform_8(%arg0: i32) -> (i32, i32) {
    %c0_i32 = arith.constant 0 : i32
    %c0_i32_0 = arith.constant 0 : i32
    return %arg0, %c0_i32 : i32, i32
  }
  func.func @transform_9(%arg0: i32) -> (i32, i32) {
    %c0_i32 = arith.constant 0 : i32
    %c0_i32_0 = arith.constant 0 : i32
    return %arg0, %c0_i32 : i32, i32
  }
}

</mosaic_0001>

<llo_original>
// kernel: network_forward.1
$region0: #{network_forward.1}
  #allocation0 [shape = 'u32[]', space=smem, size = 0x4, offset = 0x4, fixed_abs, tag = 'smem constant byte address 0x4 - core index']
  #allocation1 [shape = 'u32[72,128]{1,0:T(1,128)}', space=vmem, size = 0x9000, scoped, tag = 'internal scratch']
  %s0 = inlined_call_operand.vmem [shape: f32[2,4,256], index: 0, kind: input, shape index: {}]
  %s1 = inlined_call_operand.vmem [shape: f32[2,4,256], index: 1, kind: input, shape index: {}]
  %s2 = inlined_call_operand.vmem [shape: bf16[4,32], index: 2, kind: input, shape index: {}]
  %s3 = inlined_call_operand.vmem [shape: f32[1,32], index: 3, kind: input, shape index: {}]
  %s4 = inlined_call_operand.vmem [shape: bf16[32,64], index: 4, kind: input, shape index: {}]
  %s5 = inlined_call_operand.vmem [shape: f32[1,64], index: 5, kind: input, shape index: {}]
  %s6 = inlined_call_operand.vmem [shape: bf16[64,128], index: 6, kind: input, shape index: {}]
  %s7 = inlined_call_operand.vmem [shape: f32[1,128], index: 7, kind: input, shape index: {}]
  %s8 = inlined_call_operand.vmem [shape: f32[2,128], index: 8, kind: output, shape index: {0}]
  %s9 = inlined_call_operand.vmem [shape: f32[2,128], index: 9, kind: output, shape index: {1}]
  %10 = xla_tuple %s8, %s9
  %s11 = sld [smem:[#allocation0]]
  $region50: #{network_forward.1} parent=0
    _
  %s13 = ssub.s32 1, %s11
  %s14 = scalar_select 0, %s13, %s11
  // Predicated region
  $region2: #{network_forward.1} parent=0 // pred_check
    _
  $region3: #{network_forward.1} parent=0 // pred_check_branch
    %16 = sbr.rel (0) target = $region5
  $region4: #{network_forward.1} parent=0 // pred_region
    _
  $region5: #{network_forward.1} parent=0 // pred_fallthru
    _
  // Predicated region
  $region6: #{network_forward.1} parent=0 // pred_check
    _
  $region7: #{network_forward.1} parent=0 // pred_check_branch
    %18 = sbr.rel (0) target = $region9
  $region8: #{network_forward.1} parent=0 // pred_region
    _
  $region9: #{network_forward.1} parent=0 // pred_fallthru
    _
  // Predicated region
  $region10: #{network_forward.1} parent=0 // pred_check
    _
  $region11: #{network_forward.1} parent=0 // pred_check_branch
    %20 = sbr.rel (0) target = $region13
  $region12: #{network_forward.1} parent=0 // pred_region
    _
  $region13: #{network_forward.1} parent=0 // pred_fallthru
    _
  // Predicated region
  $region14: #{network_forward.1} parent=0 // pred_check
    _
  $region15: #{network_forward.1} parent=0 // pred_check_branch
    %22 = sbr.rel (0) target = $region17
  $region16: #{network_forward.1} parent=0 // pred_region
    _
  $region17: #{network_forward.1} parent=0 // pred_fallthru
    _
  // Predicated region
  $region18: #{network_forward.1} parent=0 // pred_check
    _
  $region19: #{network_forward.1} parent=0 // pred_check_branch
    %24 = sbr.rel (0) target = $region21
  $region20: #{network_forward.1} parent=0 // pred_region
    _
  $region21: #{network_forward.1} parent=0 // pred_fallthru
    _
  // Predicated region
  $region22: #{network_forward.1} parent=0 // pred_check
    _
  $region23: #{network_forward.1} parent=0 // pred_check_branch
    %26 = sbr.rel (0) target = $region25
  $region24: #{network_forward.1} parent=0 // pred_region
    _
  $region25: #{network_forward.1} parent=0 // pred_fallthru
    _
  // Predicated region
  $region26: #{network_forward.1} parent=0 // pred_check
    _
  $region27: #{network_forward.1} parent=0 // pred_check_branch
    %28 = sbr.rel (0) target = $region29
  $region28: #{network_forward.1} parent=0 // pred_region
    _
  $region29: #{network_forward.1} parent=0 // pred_fallthru
    _
  // Predicated region
  $region30: #{network_forward.1} parent=0 // pred_check
    _
  $region31: #{network_forward.1} parent=0 // pred_check_branch
    %30 = sbr.rel (0) target = $region33
  $region32: #{network_forward.1} parent=0 // pred_region
    _
  $region33: #{network_forward.1} parent=0 // pred_fallthru
    _
  %v32 = vld [vmem:[%s0] sm:$0xff]
  %v33 = vld [vmem:[%s0 + $0x8] sm:$0xff]
  %36 = vst [vmem:[#allocation1] ss:$2 sm:$0xff] %v32
  %v37 = vld.sshfl [vmem:[#allocation1] sm:$0xff pattern:$0x75316420]
  %v38 = vld.sshfl [vmem:[#allocation1 + $0x8] sm:$0xff pattern:$0x75316420]
  %s39 = scalar_lea.vmem [#allocation1], 16
  %40 = vst [vmem:[%s39] ss:$2 sm:$0xff] %v33
  %v41 = vld.sshfl [vmem:[#allocation1 + $0x10] sm:$0xff pattern:$0x75316420]
  %v42 = vld.sshfl [vmem:[#allocation1 + $0x18] sm:$0xff pattern:$0x75316420]
  %vm47 = vcmask 1043456
  %v48 = vsel %vm47, %v37, 0.0
  %v49 = vsel %vm47, %v38, 0.0
  %v50 = vadd.f32 %v48, %v49
  %51 = vadd.xlane.f32.xlu0 %v50
  %v52 = vpop.xlane.xlu0 %51
  %v53 = vsel %vm47, %v41, 0.0
  %v54 = vsel %vm47, %v42, 0.0
  %v55 = vadd.f32 %v53, %v54
  %56 = vadd.xlane.f32.xlu0 %v55
  %v57 = vpop.xlane.xlu0 %56
  %v58 = vmul.f32 %v52, 0.00390625
  %v59 = vmul.f32 %v57, 0.00390625
  %v60 = vpack.c.bf16 %v58, %v58
  %v61 = vpack.c.bf16 %v59, %v59
  %v62 = vld [vmem:[%s2] sm:$0x3]
  %v63 = vld [vmem:[%s3] sm:$0x1]
  %v65 = vperm.slane %v63, 0
  %v69 = vunpack.c.l.b16 %v60
  %v70 = vunpack.c.l.b16 %v61
  %v71 = vlaneseq
  %v72 = vand.u32 %v71, 127
  %v73 = vperm.slane %v69, %v72
  %v74 = vperm.slane %v70, %v72
  %vm75 = vcmask 1041409
  %v76 = vsel %vm75, %v74, %v73
  %v77 = vpack.c.b16 %v76, %v76
  %vm78 = vcmask 31744
  %v80 = vsel %vm78, %v77, 0
  %vm82 = vcmask 1041408
  %v84 = vsel %vm82, %v62, 0
  %86 = vmatpush.bf16.msra.mxu0 0
  %87 = vmatpush.bf16.msra.mxu0 0
  %88 = vmatpush.bf16.msra.mxu0 0
  %89 = vmatpush.bf16.msra.mxu0 0
  %90 = vmatpush.bf16.msra.mxu0 0
  %91 = vmatpush.bf16.msra.mxu0 0
  %92 = vmatpush.bf16.msra.mxu0 0
  %93 = vmatpush.bf16.msra.mxu0 %v84
  %94 = vmatmul.bf16.gmra.mxu0 %v80
  %v95 = vpop.f32.mrf.mxu0
  %v96 = vadd.f32 %v65, %v95
  %v97 = vpop.f32.mrf.mxu0
  %98 = vdwg.mxu0
  %v99 = vmax.f32 %v96, 0.0
  %v100 = vpack.c.bf16 %v99, %v99
  %v101 = vld [vmem:[%s4] sm:$0xf]
  %v102 = vld [vmem:[%s4 + $0x4] sm:$0xf]
  %v103 = vld [vmem:[%s4 + $0x8] sm:$0xf]
  %v104 = vld [vmem:[%s4 + $0xc] sm:$0xf]
  %v105 = vld [vmem:[%s5] sm:$0x1]
  %v107 = vperm.slane %v105, 0
  %v113 = vunpack.c.l.b16 %v101
  %v114 = vunpack.c.l.b16 %v102
  %v115 = vunpack.c.l.b16 %v103
  %v116 = vunpack.c.l.b16 %v104
  %v117 = vpack.c.b16 %v114, %v113
  %v118 = vpack.c.b16 %v116, %v115
  %vm121 = vcmask 261120
  %v123 = vsel %vm121, %v100, 0
  %125 = vmatpush.bf16.msra.mxu0 0
  %126 = vmatpush.bf16.msra.mxu0 0
  %127 = vmatpush.bf16.msra.mxu0 0
  %128 = vmatpush.bf16.msra.mxu0 0
  %129 = vmatpush.bf16.msra.mxu0 0
  %130 = vmatpush.bf16.msra.mxu0 0
  %131 = vmatpush.bf16.msra.mxu0 %v118
  %132 = vmatpush.bf16.msra.mxu0 %v117
  %133 = vmatmul.bf16.gmra.mxu0 %v123
  %v134 = vpop.f32.mrf.mxu0
  %v135 = vadd.f32 %v107, %v134
  %v136 = vpop.f32.mrf.mxu0
  %137 = vdwg.mxu0
  %v138 = vmax.f32 %v135, 0.0
  %v139 = vpack.c.bf16 %v138, %v138
  %v140 = vld [vmem:[%s6] sm:$0xf]
  %v141 = vld [vmem:[%s6 + $0x4] sm:$0xf]
  %v142 = vld [vmem:[%s6 + $0x8] sm:$0xf]
  %v143 = vld [vmem:[%s6 + $0xc] sm:$0xf]
  %v144 = vld [vmem:[%s6 + $0x10] sm:$0xf]
  %v145 = vld [vmem:[%s6 + $0x14] sm:$0xf]
  %v146 = vld [vmem:[%s6 + $0x18] sm:$0xf]
  %v147 = vld [vmem:[%s6 + $0x1c] sm:$0xf]
  %v148 = vld [vmem:[%s7] sm:$0x1]
  %v150 = vperm.slane %v148, 0
  %v160 = vunpack.c.l.b16 %v140
  %v161 = vunpack.c.l.b16 %v141
  %v162 = vunpack.c.l.b16 %v142
  %v163 = vunpack.c.l.b16 %v143
  %v164 = vunpack.c.l.b16 %v144
  %v165 = vunpack.c.l.b16 %v145
  %v166 = vunpack.c.l.b16 %v146
  %v167 = vunpack.c.l.b16 %v147
  %v168 = vpack.c.b16 %v161, %v160
  %v169 = vpack.c.b16 %v163, %v162
  %v170 = vpack.c.b16 %v165, %v164
  %v171 = vpack.c.b16 %v167, %v166
  %vm176 = vcmask 523264
  %v178 = vsel %vm176, %v139, 0
  %180 = vmatpush.bf16.msra.mxu0 0
  %181 = vmatpush.bf16.msra.mxu0 0
  %182 = vmatpush.bf16.msra.mxu0 0
  %183 = vmatpush.bf16.msra.mxu0 0
  %184 = vmatpush.bf16.msra.mxu0 %v171
  %185 = vmatpush.bf16.msra.mxu0 %v170
  %186 = vmatpush.bf16.msra.mxu0 %v169
  %187 = vmatpush.bf16.msra.mxu0 %v168
  %188 = vmatmul.bf16.gmra.mxu0 %v178
  %v189 = vpop.f32.mrf.mxu0
  %v190 = vadd.f32 %v150, %v189
  %v191 = vpop.f32.mrf.mxu0
  %192 = vdwg.mxu0
  %vm193 = vcmp.lt.s32.totalorder %v72, 16
  %vm194 = vcmp.ge.s32.totalorder %v72, 16
  %vm195 = vcmp.lt.s32.totalorder %v72, 26
  %vm196 = vmand %vm194, %vm195
  %v197 = vmul.f32 %v190, %v190
  %v198 = vsel %vm193, %v197, 0.0
  %v199 = vsel %vm82, %v198, 0.0
  %200 = vadd.xlane.f32.xlu0 %v199
  %v201 = vpop.xlane.xlu0 %200
  %v202 = vmax.f32 %v201, 1e-24
  %v203 = vrsqrt.pop %v202
  %v204 = vmul.f32 %v203, %v202
  %v205 = vmul.f32 %v204, %v203
  %v206 = vmul.f32 0.5, %v205
  %v207 = vsub.f32 1.5, %v206
  %v208 = vmul.f32 %v203, %v207
  %vm209 = vweird.f32 %v202
  %vm210 = vweird.f32 %v203
  %vm211 = vmor %vm209, %vm210
  %v212 = vsel %vm211, %v203, %v208
  %v213 = vsel %vm196, %v190, -inf
  %v214 = vsel %vm82, %v213, -inf
  %215 = vmax.xlane.f32.xlu0 %v214
  %v216 = vpop.xlane.xlu0 %215
  %v217 = vsub.f32 %v213, %v216
  %v218 = vmul.f32 %v217, 1.442695
  %v219 = vpow.pop %v218
  %v220 = vsel %vm82, %v219, 0.0
  %221 = vadd.xlane.f32.xlu0 %v220
  %v222 = vpop.xlane.xlu0 %221
  %v223 = vmul.f32 %v190, %v212
  %v224 = vrcp.pop %v222
  %v225 = vmul.f32 %v222, %v224
  %v226 = vsub.f32 1.0, %v225
  %v227 = vmul.f32 %v224, %v226
  %v228 = vadd.f32 %v224, %v227
  %vm229 = vweird.f32 %v222
  %vm230 = vweird.f32 %v224
  %vm231 = vmor %vm229, %vm230
  %v232 = vsel %vm231, %v224, %v228
  %v233 = vand.u32 2147483647, %v222
  %vm234 = vcmp.eq.f32.partialorder %v233, 8.507059e+37
  %v235 = vand.u32 %v222, 2147483648
  %v236 = vor.u32 1.1754944e-38, %v235
  %v237 = vsel %vm234, %v236, %v232
  %v238 = vmul.f32 %v219, %v237
  %v239 = vsel %vm193, %v223, %v238
  %240 = vst [vmem:[%s8] sm:$0x3] %v239
  %v241 = vld [vmem:[%s1] sm:$0xff]
  %v242 = vld [vmem:[%s1 + $0x8] sm:$0xff]
  %245 = vst [vmem:[#allocation1] ss:$2 sm:$0xff] %v241
  %v246 = vld.sshfl [vmem:[#allocation1] sm:$0xff pattern:$0x75316420]
  %v247 = vld.sshfl [vmem:[#allocation1 + $0x8] sm:$0xff pattern:$0x75316420]
  %s248 = scalar_lea.vmem [#allocation1], 16
  %249 = vst [vmem:[%s248] ss:$2 sm:$0xff] %v242
  %v250 = vld.sshfl [vmem:[#allocation1 + $0x10] sm:$0xff pattern:$0x75316420]
  %v251 = vld.sshfl [vmem:[#allocation1 + $0x18] sm:$0xff pattern:$0x75316420]
  %v256 = vsel %vm47, %v246, 0.0
  %v257 = vsel %vm47, %v247, 0.0
  %v258 = vadd.f32 %v256, %v257
  %259 = vadd.xlane.f32.xlu0 %v258
  %v260 = vpop.xlane.xlu0 %259
  %v261 = vsel %vm47, %v250, 0.0
  %v262 = vsel %vm47, %v251, 0.0
  %v263 = vadd.f32 %v261, %v262
  %264 = vadd.xlane.f32.xlu0 %v263
  %v265 = vpop.xlane.xlu0 %264
  %v266 = vmul.f32 %v260, 0.00390625
  %v267 = vmul.f32 %v265, 0.00390625
  %v268 = vpack.c.bf16 %v266, %v266
  %v269 = vpack.c.bf16 %v267, %v267
  %v270 = vld [vmem:[%s2] sm:$0x3]
  %v271 = vld [vmem:[%s3] sm:$0x1]
  %v273 = vperm.slane %v271, 0
  %v277 = vunpack.c.l.b16 %v268
  %v278 = vunpack.c.l.b16 %v269
  %v279 = vperm.slane %v277, %v72
  %v280 = vperm.slane %v278, %v72
  %v281 = vsel %vm75, %v280, %v279
  %v282 = vpack.c.b16 %v281, %v281
  %v284 = vsel %vm78, %v282, 0
  %v287 = vsel %vm82, %v270, 0
  %289 = vmatpush.bf16.msra.mxu0 0
  %290 = vmatpush.bf16.msra.mxu0 0
  %291 = vmatpush.bf16.msra.mxu0 0
  %292 = vmatpush.bf16.msra.mxu0 0
  %293 = vmatpush.bf16.msra.mxu0 0
  %294 = vmatpush.bf16.msra.mxu0 0
  %295 = vmatpush.bf16.msra.mxu0 0
  %296 = vmatpush.bf16.msra.mxu0 %v287
  %297 = vmatmul.bf16.gmra.mxu0 %v284
  %v298 = vpop.f32.mrf.mxu0
  %v299 = vadd.f32 %v273, %v298
  %v300 = vpop.f32.mrf.mxu0
  %301 = vdwg.mxu0
  %v302 = vmax.f32 %v299, 0.0
  %v303 = vpack.c.bf16 %v302, %v302
  %v304 = vld [vmem:[%s4] sm:$0xf]
  %v305 = vld [vmem:[%s4 + $0x4] sm:$0xf]
  %v306 = vld [vmem:[%s4 + $0x8] sm:$0xf]
  %v307 = vld [vmem:[%s4 + $0xc] sm:$0xf]
  %v308 = vld [vmem:[%s5] sm:$0x1]
  %v310 = vperm.slane %v308, 0
  %v316 = vunpack.c.l.b16 %v304
  %v317 = vunpack.c.l.b16 %v305
  %v318 = vunpack.c.l.b16 %v306
  %v319 = vunpack.c.l.b16 %v307
  %v320 = vpack.c.b16 %v317, %v316
  %v321 = vpack.c.b16 %v319, %v318
  %v325 = vsel %vm121, %v303, 0
  %327 = vmatpush.bf16.msra.mxu0 0
  %328 = vmatpush.bf16.msra.mxu0 0
  %329 = vmatpush.bf16.msra.mxu0 0
  %330 = vmatpush.bf16.msra.mxu0 0
  %331 = vmatpush.bf16.msra.mxu0 0
  %332 = vmatpush.bf16.msra.mxu0 0
  %333 = vmatpush.bf16.msra.mxu0 %v321
  %334 = vmatpush.bf16.msra.mxu0 %v320
  %335 = vmatmul.bf16.gmra.mxu0 %v325
  %v336 = vpop.f32.mrf.mxu0
  %v337 = vadd.f32 %v310, %v336
  %v338 = vpop.f32.mrf.mxu0
  %339 = vdwg.mxu0
  %v340 = vmax.f32 %v337, 0.0
  %v341 = vpack.c.bf16 %v340, %v340
  %v342 = vld [vmem:[%s6] sm:$0xf]
  %v343 = vld [vmem:[%s6 + $0x4] sm:$0xf]
  %v344 = vld [vmem:[%s6 + $0x8] sm:$0xf]
  %v345 = vld [vmem:[%s6 + $0xc] sm:$0xf]
  %v346 = vld [vmem:[%s6 + $0x10] sm:$0xf]
  %v347 = vld [vmem:[%s6 + $0x14] sm:$0xf]
  %v348 = vld [vmem:[%s6 + $0x18] sm:$0xf]
  %v349 = vld [vmem:[%s6 + $0x1c] sm:$0xf]
  %v350 = vld [vmem:[%s7] sm:$0x1]
  %v352 = vperm.slane %v350, 0
  %v362 = vunpack.c.l.b16 %v342
  %v363 = vunpack.c.l.b16 %v343
  %v364 = vunpack.c.l.b16 %v344
  %v365 = vunpack.c.l.b16 %v345
  %v366 = vunpack.c.l.b16 %v346
  %v367 = vunpack.c.l.b16 %v347
  %v368 = vunpack.c.l.b16 %v348
  %v369 = vunpack.c.l.b16 %v349
  %v370 = vpack.c.b16 %v363, %v362
  %v371 = vpack.c.b16 %v365, %v364
  %v372 = vpack.c.b16 %v367, %v366
  %v373 = vpack.c.b16 %v369, %v368
  %v379 = vsel %vm176, %v341, 0
  %381 = vmatpush.bf16.msra.mxu0 0
  %382 = vmatpush.bf16.msra.mxu0 0
  %383 = vmatpush.bf16.msra.mxu0 0
  %384 = vmatpush.bf16.msra.mxu0 0
  %385 = vmatpush.bf16.msra.mxu0 %v373
  %386 = vmatpush.bf16.msra.mxu0 %v372
  %387 = vmatpush.bf16.msra.mxu0 %v371
  %388 = vmatpush.bf16.msra.mxu0 %v370
  %389 = vmatmul.bf16.gmra.mxu0 %v379
  %v390 = vpop.f32.mrf.mxu0
  %v391 = vadd.f32 %v352, %v390
  %v392 = vpop.f32.mrf.mxu0
  %393 = vdwg.mxu0
  %v394 = vmul.f32 %v391, %v391
  %v395 = vsel %vm193, %v394, 0.0
  %v396 = vsel %vm82, %v395, 0.0
  %397 = vadd.xlane.f32.xlu0 %v396
  %v398 = vpop.xlane.xlu0 %397
  %v399 = vmax.f32 %v398, 1e-24
  %v400 = vrsqrt.pop %v399
  %v401 = vmul.f32 %v400, %v399
  %v402 = vmul.f32 %v401, %v400
  %v403 = vmul.f32 0.5, %v402
  %v404 = vsub.f32 1.5, %v403
  %v405 = vmul.f32 %v400, %v404
  %vm406 = vweird.f32 %v399
  %vm407 = vweird.f32 %v400
  %vm408 = vmor %vm406, %vm407
  %v409 = vsel %vm408, %v400, %v405
  %v410 = vsel %vm196, %v391, -inf
  %v411 = vsel %vm82, %v410, -inf
  %412 = vmax.xlane.f32.xlu0 %v411
  %v413 = vpop.xlane.xlu0 %412
  %v414 = vsub.f32 %v410, %v413
  %v415 = vmul.f32 %v414, 1.442695
  %v416 = vpow.pop %v415
  %v417 = vsel %vm82, %v416, 0.0
  %418 = vadd.xlane.f32.xlu0 %v417
  %v419 = vpop.xlane.xlu0 %418
  %v420 = vmul.f32 %v391, %v409
  %v421 = vrcp.pop %v419
  %v422 = vmul.f32 %v419, %v421
  %v423 = vsub.f32 1.0, %v422
  %v424 = vmul.f32 %v421, %v423
  %v425 = vadd.f32 %v421, %v424
  %vm426 = vweird.f32 %v419
  %vm427 = vweird.f32 %v421
  %vm428 = vmor %vm426, %vm427
  %v429 = vsel %vm428, %v421, %v425
  %v430 = vand.u32 2147483647, %v419
  %vm431 = vcmp.eq.f32.partialorder %v430, 8.507059e+37
  %v432 = vand.u32 %v419, 2147483648
  %v433 = vor.u32 1.1754944e-38, %v432
  %v434 = vsel %vm431, %v433, %v429
  %v435 = vmul.f32 %v416, %v434
  %v436 = vsel %vm193, %v420, %v435
  %437 = vst [vmem:[%s9] sm:$0x3] %v436
  // Predicated region
  $region34: #{network_forward.1} parent=0 // pred_check
    _
  $region35: #{network_forward.1} parent=0 // pred_check_branch
    %439 = sbr.rel (0) target = $region37
  $region36: #{network_forward.1} parent=0 // pred_region
    _
  $region37: #{network_forward.1} parent=0 // pred_fallthru
    _
  // Predicated region
  $region38: #{network_forward.1} parent=0 // pred_check
    _
  $region39: #{network_forward.1} parent=0 // pred_check_branch
    %441 = sbr.rel (0) target = $region41
  $region40: #{network_forward.1} parent=0 // pred_region
    _
  $region41: #{network_forward.1} parent=0 // pred_fallthru
    _
  // Predicated region
  $region42: #{network_forward.1} parent=0 // pred_check
    _
  $region43: #{network_forward.1} parent=0 // pred_check_branch
    %443 = sbr.rel (0) target = $region45
  $region44: #{network_forward.1} parent=0 // pred_region
    _
  $region45: #{network_forward.1} parent=0 // pred_fallthru
    _
  // Predicated region
  $region46: #{network_forward.1} parent=0 // pred_check
    _
  $region47: #{network_forward.1} parent=0 // pred_check_branch
    %445 = sbr.rel (0) target = $region49
  $region48: #{network_forward.1} parent=0 // pred_region
    _
  $region49: #{network_forward.1} parent=0 // pred_fallthru
    _

</llo_original>
